<compile_context>
chip_gen: v6e
topology: v6e:2x2x1
jax: 0.10.0
libtpu: 0.0.40
codegen_flags: <defaults>
</compile_context>

<pallas_src>
import functools

import jax
import jax.numpy as jnp
from jax.experimental import pallas as pl
from jax.experimental.pallas import tpu as pltpu


def _round_up(x, m):
    return (x + m - 1) // m * m


# ----------------------------------------------------------------------------- 
# Hardware-aware defaults
# -----------------------------------------------------------------------------
def _hardware_config():
    """Returns (vmem_cap_bytes, tm, th, weight_buffers, min_m_tiles)."""
    kind = ""
    try:
        kind = jax.devices()[0].device_kind.lower()
    except Exception:
        pass
    vmem_cap = None
    try:
        vmem_cap = int(pltpu.get_tpu_info().vmem_capacity_bytes)
    except Exception:
        vmem_cap = None

    is_v7 = "v7" in kind
    is_v5e = ("v5" in kind) and ("lite" in kind or "5e" in kind)
    if vmem_cap is None:
        vmem_cap = (64 << 20) if is_v7 else (128 << 20)

    if is_v7 or vmem_cap <= (64 << 20):
        # v7x: 64 MiB VMEM / 2 TCs -> smaller hidden tile, big row tile, 2 M-tiles.
        return vmem_cap, 512, 256, 2, 2
    if is_v5e:
        # v5e: sits at the compute/memory crossover at tm~256; triple-buffer weights.
        return vmem_cap, 256, 512, 3, 1
    # v6e (and default): large row tile to get above ~640 flops/byte.
    return vmem_cap, 512, 512, 2, 1


# ----------------------------------------------------------------------------- 
# One-time weight preparation (hoisted out of the per-call path)
# -----------------------------------------------------------------------------
def prepare_gated_ffn_weights(w1_t, wg_t, w2_t, *, th, compute_dtype=jnp.bfloat16):
    """w1_t, wg_t: (E, H); w2_t: (H, E).

    Returns (w13, w2p, th_eff) where w13 is the padded bf16 fused layout: hidden
    tile h occupies columns [h*2*th_eff, (h+1)*2*th_eff) as [W1 tile | WG tile].
    """
    E, H = w1_t.shape
    Ep = _round_up(E, 128)
    th_eff = min(th, _round_up(H, 128))
    Hp = _round_up(H, th_eff)
    num_h = Hp // th_eff

    w1p = jnp.pad(w1_t, ((0, Ep - E), (0, Hp - H))).astype(compute_dtype)
    wgp = jnp.pad(wg_t, ((0, Ep - E), (0, Hp - H))).astype(compute_dtype)
    w2p = jnp.pad(w2_t, ((0, Hp - H), (0, Ep - E))).astype(compute_dtype)

    w13 = jnp.concatenate(
        [w1p.reshape(Ep, num_h, th_eff), wgp.reshape(Ep, num_h, th_eff)],
        axis=2).reshape(Ep, num_h * 2 * th_eff)
    return w13, w2p, th_eff


# ----------------------------------------------------------------------------- 
# Kernel
# -----------------------------------------------------------------------------
def gated_ffn_kernel(x_ref, w13_ref, w2_ref, o_ref, acc_ref):
    """One (row-tile, hidden-tile) step of out = (x@W1) * silu(x@WG) @ W2."""
    h = pl.program_id(1)
    th = w13_ref.shape[1] // 2  # static

    @pl.when(h == 0)
    def _():
        acc_ref[...] = jnp.zeros_like(acc_ref)

    # Fused up-projection: one (tm, E) x (E, 2*th) MXU matmul, f32 accumulate.
    up = jnp.dot(x_ref[...], w13_ref[...], preferred_element_type=jnp.float32)
    h1 = up[:, :th]
    hg = up[:, th:]

    # SiLU gate in f32 (VPU + EUP).
    gated = h1 * (hg * jax.nn.sigmoid(hg))

    # Down projection for this hidden tile; accumulate in f32.
    acc_ref[...] += jnp.dot(gated.astype(w2_ref.dtype), w2_ref[...],
                            preferred_element_type=jnp.float32)

    @pl.when(h == pl.num_programs(1) - 1)
    def _():
        o_ref[...] = acc_ref[...].astype(o_ref.dtype)


# ----------------------------------------------------------------------------- 
# pallas_call wrapper (weights already prepared)
# -----------------------------------------------------------------------------
@functools.partial(
    jax.jit,
    static_argnames=("tm", "th", "out_dtype", "weight_buffers",
                     "min_m_tiles", "vmem_cap_bytes"))
def gated_ffn_fused(x, w13, w2p, *, tm, th, out_dtype=None,
                    weight_buffers=2, min_m_tiles=1,
                    vmem_cap_bytes=128 * 1024 * 1024):
    """x: (B, T, E); w13: (Ep, 2*Hp) fused bf16; w2p: (Hp, Ep) bf16."""
    B, T, E = x.shape
    M = B * T
    compute_dtype = w13.dtype
    out_dtype = x.dtype if out_dtype is None else out_dtype

    Hp, Ep = w2p.shape
    assert w13.shape == (Ep, 2 * Hp), "w13 layout does not match w2p"
    assert Ep % 128 == 0 and Ep >= E
    assert th % 128 == 0 and Hp % th == 0
    num_h = Hp // th

    # --- Row tiling -----------------------------------------------------------
    tm = max(128, _round_up(tm, 128))
    tm_eff = min(tm, _round_up(M, 16))          # tiny M -> block == full padded dim
    Mp = _round_up(M, tm_eff)
    # Megacore (v7x): keep >=min_m_tiles M-tiles so the "parallel" axis feeds both TCs.
    while Mp // tm_eff < min_m_tiles and tm_eff > 128:
        tm_eff = max(128, tm_eff // 2)
        Mp = _round_up(M, tm_eff)

    # --- Activations: pad only if needed, cast once ---------------------------
    x2d = x.reshape(M, E)
    if Mp != M or Ep != E:
        x2d = jnp.pad(x2d, ((0, Mp - M), (0, Ep - E)))
    if x2d.dtype != compute_dtype:
        x2d = x2d.astype(compute_dtype)

    # --- VMEM budget: exact buffer sum + headroom, generation-aware cap -------
    bpe = jnp.dtype(compute_dtype).itemsize          # 2 for bf16
    out_bpe = jnp.dtype(out_dtype).itemsize
    n_w = weight_buffers
    vmem_bytes = (
        2 * tm_eff * Ep * bpe                        # x blocks (double-buffered)
        + n_w * Ep * (2 * th) * bpe                  # fused [W1|WG] blocks
        + n_w * th * Ep * bpe                        # W2 blocks
        + 2 * tm_eff * Ep * out_bpe                  # output blocks
        + tm_eff * Ep * 4                            # f32 accumulator scratch
        + tm_eff * th * (8 + 4 + 2)                  # f32 up/gate + bf16 cast temps
    )
    vmem_bytes = int(vmem_bytes + vmem_bytes // 4 + (2 << 20))
    vmem_bytes = min(vmem_bytes, int(0.8 * vmem_cap_bytes))

    # --- Cost estimate: weights stream once per M tile ------------------------
    num_m = Mp // tm_eff
    cost = pl.CostEstimate(
        flops=6 * Mp * Ep * Hp,                      # up (2*M*E*2H) + down (2*M*H*E)
        transcendentals=Mp * Hp,                     # sigmoid
        bytes_accessed=(Mp * Ep * bpe
                        + num_m * (w13.size + w2p.size) * bpe
                        + Mp * Ep * out_bpe),
    )

    def wspec(shape, index_map):
        if weight_buffers != 2:
            try:
                return pl.BlockSpec(shape, index_map,
                                    pipeline_mode=pl.Buffered(weight_buffers))
            except TypeError:  # older API without pipeline_mode
                pass
        return pl.BlockSpec(shape, index_map)

    grid = (num_m, num_h)

    out2d = pl.pallas_call(
        gated_ffn_kernel,
        out_shape=jax.ShapeDtypeStruct((Mp, Ep), out_dtype),
        grid_spec=pltpu.PrefetchScalarGridSpec(
            num_scalar_prefetch=0,
            grid=grid,
            in_specs=[
                # x row tile: constant over h -> resident across the reduction axis.
                pl.BlockSpec((tm_eff, Ep), lambda m, h: (m, 0)),
                # fused [W1 | WG] hidden tile (streams over h).
                wspec((Ep, 2 * th), lambda m, h: (0, h)),
                # W2 hidden tile (streams over h).
                wspec((th, Ep), lambda m, h: (h, 0)),
            ],
            out_specs=pl.BlockSpec((tm_eff, Ep), lambda m, h: (m, 0)),
            scratch_shapes=[pltpu.VMEM((tm_eff, Ep), jnp.float32)],
        ),
        compiler_params=pltpu.CompilerParams(
            dimension_semantics=("parallel", "arbitrary"),
            vmem_limit_bytes=vmem_bytes),
        cost_estimate=cost,
    )(x2d, w13, w2p)

    if Mp != M or Ep != E:
        out2d = out2d[:M, :E]
    return out2d.reshape(B, T, E)


# ----------------------------------------------------------------------------- 
# Convenience one-shot wrapper (prep + call); prefer prep once + gated_ffn_fused.
# -----------------------------------------------------------------------------
def gated_ffn(x, w1_t, wg_t, w2_t, *, out_dtype=None):
    vmem_cap, tm, th, wbuf, min_m = _hardware_config()
    w13, w2p, th_eff = prepare_gated_ffn_weights(w1_t, wg_t, w2_t, th=th)
    return gated_ffn_fused(x, w13, w2p, tm=tm, th=th_eff, out_dtype=out_dtype,
                           weight_buffers=wbuf, min_m_tiles=min_m,
                           vmem_cap_bytes=vmem_cap)


# ----------------------------------------------------------------------------- 
# Reference + params (match the PyTorch module)
# -----------------------------------------------------------------------------
def init_params(key, n_embed):
    """Matches the PyTorch module's shapes; returns (in, out)-transposed weights."""
    hidden = int(n_embed * 8.0 / 3.0)
    k1, k2, k3 = jax.random.split(key, 3)
    b1 = 1.0 / (n_embed ** 0.5)
    b2 = 1.0 / (hidden ** 0.5)
    w1 = jax.random.uniform(k1, (hidden, n_embed), jnp.float32, -b1, b1)
    wg = jax.random.uniform(k2, (hidden, n_embed), jnp.float32, -b1, b1)
    w2 = jax.random.uniform(k3, (n_embed, hidden), jnp.float32, -b2, b2)
    return w1.T, wg.T, w2.T  # (E,H), (E,H), (H,E)


def gated_ffn_ref(x, w1_t, wg_t, w2_t):
    h1 = x @ w1_t
    hg = x @ wg_t
    return (h1 * (hg * jax.nn.sigmoid(hg))) @ w2_t


if __name__ == "__main__":
    # Small shapes consistent with the module: n_embed=96 -> hidden=256.
    B, T, E = 2, 8, 96
    key = jax.random.PRNGKey(0)
    kx, kp = jax.random.split(key)

    x = jax.random.normal(kx, (B, T, E), dtype=jnp.float32)
    w1_t, wg_t, w2_t = init_params(kp, E)

    # Hoisted weight prep: done ONCE, reused across calls.
    vmem_cap, tm, th, wbuf, min_m = _hardware_config()
    w13, w2p, th_eff = prepare_gated_ffn_weights(w1_t, wg_t, w2_t, th=th)
    w13 = jax.block_until_ready(w13)
    w2p = jax.block_until_ready(w2p)

    run = lambda xin: gated_ffn_fused(
        xin, w13, w2p, tm=tm, th=th_eff, weight_buffers=wbuf,
        min_m_tiles=min_m, vmem_cap_bytes=vmem_cap)

    out = jax.block_until_ready(run(x))
    ref = gated_ffn_ref(x, w1_t, wg_t, w2_t)
    assert out.shape == (B, T, E)
    # bf16 MXU inputs with f32 accumulation -> loose-ish tolerance vs f32 ref.
    assert jnp.allclose(out, ref, atol=2e-2, rtol=2e-2)

    # Tail handling: M = B*T not a multiple of the tile -> padded, not dropped.
    x_odd = jax.random.normal(kx, (2, 7, E), dtype=jnp.float32)
    out_odd = jax.block_until_ready(run(x_odd))
    ref_odd = gated_ffn_ref(x_odd, w1_t, wg_t, w2_t)
    assert out_odd.shape == (2, 7, E)
    assert jnp.allclose(out_odd, ref_odd, atol=2e-2, rtol=2e-2)

    print("KERNEL_OK")
</pallas_src>

<mosaic_0001>
module attributes {stable_mosaic.version = 11 : i64} {
  func.func @gated_ffn_kernel(%arg0: i32, %arg1: i32, %arg2: memref<16x128xbf16, #tpu.memory_space<vmem>>, %arg3: memref<128x512xbf16, #tpu.memory_space<vmem>>, %arg4: memref<256x128xbf16, #tpu.memory_space<vmem>>, %arg5: memref<16x128xf32, #tpu.memory_space<vmem>>, %arg6: memref<16x128xf32, #tpu.memory_space<vmem>>) attributes {dimension_semantics = [#tpu.dimension_semantics<parallel>, #tpu.dimension_semantics<arbitrary>], iteration_bounds = array<i64: 1, 1>, scalar_prefetch = 0 : i64, scratch_operands = 1 : i64, tpu.core_type = #tpu.core_type<tc>, window_params = [{transform_indices = @transform_0, window_bounds = array<i64: 16, 128>}, {transform_indices = @transform_1, window_bounds = array<i64: 128, 512>}, {transform_indices = @transform_2, window_bounds = array<i64: 256, 128>}, {transform_indices = @transform_3, window_bounds = array<i64: 16, 128>}]} {
    %c0_i32 = arith.constant 0 : i32
    %0 = arith.cmpi eq, %arg1, %c0_i32 : i32
    %1 = arith.extui %0 : i1 to i32
    %c0_i32_0 = arith.constant 0 : i32
    %2 = arith.cmpi ne, %1, %c0_i32_0 : i32
    scf.if %2 {
      %cst_14 = arith.constant 0.000000e+00 : f32
      %24 = vector.broadcast %cst_14 : f32 to vector<16x128xf32>
      %c0_15 = arith.constant 0 : index
      %c0_16 = arith.constant 0 : index
      %25 = vector.load %arg6[%c0_15, %c0_16] : memref<16x128xf32, #tpu.memory_space<vmem>>, vector<16x128xf32>
      tpu.vector_store %arg6[%c0_15, %c0_16], %24 {strides = array<i32>} : memref<16x128xf32, #tpu.memory_space<vmem>>, vector<16x128xf32>,
    } else {
    }
    %c0 = arith.constant 0 : index
    %c0_1 = arith.constant 0 : index
    %3 = vector.load %arg2[%c0, %c0_1] : memref<16x128xbf16, #tpu.memory_space<vmem>>, vector<16x128xbf16>
    %c0_2 = arith.constant 0 : index
    %c0_3 = arith.constant 0 : index
    %4 = vector.load %arg3[%c0_2, %c0_3] : memref<128x512xbf16, #tpu.memory_space<vmem>>, vector<128x512xbf16>
    %cst = arith.constant dense<0.000000e+00> : vector<16x512xf32>
    %5 = tpu.matmul %3, %4, %cst {dimension_numbers = #tpu.dot_dimension_numbers<[1], [0], [0], [1], [0, 0, 1, 1], [], []>} : vector<16x128xbf16>, vector<128x512xbf16>, vector<16x512xf32> -> vector<16x512xf32>
    %6 = vector.extract_strided_slice %5 {offsets = [0, 0], sizes = [16, 256], strides = [1, 1]} : vector<16x512xf32> to vector<16x256xf32>
    %7 = vector.extract_strided_slice %5 {offsets = [0, 256], sizes = [16, 256], strides = [1, 1]} : vector<16x512xf32> to vector<16x256xf32>
    %8 = arith.negf %7 : vector<16x256xf32>
    %9 = math.exp %8 : vector<16x256xf32>
    %cst_4 = arith.constant 1.000000e+00 : f32
    %10 = vector.broadcast %cst_4 : f32 to vector<16x256xf32>
    %11 = arith.addf %10, %9 : vector<16x256xf32>
    %12 = arith.divf %10, %11 : vector<16x256xf32>
    %13 = arith.mulf %7, %12 : vector<16x256xf32>
    %14 = arith.mulf %6, %13 : vector<16x256xf32>
    %c0_5 = arith.constant 0 : index
    %c0_6 = arith.constant 0 : index
    %15 = vector.load %arg6[%c0_5, %c0_6] : memref<16x128xf32, #tpu.memory_space<vmem>>, vector<16x128xf32>
    %16 = arith.truncf %14 : vector<16x256xf32> to vector<16x256xbf16>
    %c0_7 = arith.constant 0 : index
    %c0_8 = arith.constant 0 : index
    %17 = vector.load %arg4[%c0_7, %c0_8] : memref<256x128xbf16, #tpu.memory_space<vmem>>, vector<256x128xbf16>
    %cst_9 = arith.constant dense<0.000000e+00> : vector<16x128xf32>
    %18 = tpu.matmul %16, %17, %cst_9 {dimension_numbers = #tpu.dot_dimension_numbers<[1], [0], [0], [1], [0, 0, 1, 1], [], []>} : vector<16x256xbf16>, vector<256x128xbf16>, vector<16x128xf32> -> vector<16x128xf32>
    %19 = arith.addf %15, %18 : vector<16x128xf32>
    %c0_10 = arith.constant 0 : index
    %c0_11 = arith.constant 0 : index
    %20 = vector.load %arg6[%c0_10, %c0_11] : memref<16x128xf32, #tpu.memory_space<vmem>>, vector<16x128xf32>
    tpu.vector_store %arg6[%c0_10, %c0_11], %19 {strides = array<i32>} : memref<16x128xf32, #tpu.memory_space<vmem>>, vector<16x128xf32>,
    %c0_i32_12 = arith.constant 0 : i32
    %21 = arith.cmpi eq, %arg1, %c0_i32_12 : i32
    %22 = arith.extui %21 : i1 to i32
    %c0_i32_13 = arith.constant 0 : i32
    %23 = arith.cmpi ne, %22, %c0_i32_13 : i32
    scf.if %23 {
      %c0_14 = arith.constant 0 : index
      %c0_15 = arith.constant 0 : index
      %24 = vector.load %arg6[%c0_14, %c0_15] : memref<16x128xf32, #tpu.memory_space<vmem>>, vector<16x128xf32>
      %c0_16 = arith.constant 0 : index
      %c0_17 = arith.constant 0 : index
      %25 = vector.load %arg5[%c0_16, %c0_17] : memref<16x128xf32, #tpu.memory_space<vmem>>, vector<16x128xf32>
      tpu.vector_store %arg5[%c0_16, %c0_17], %24 {strides = array<i32>} : memref<16x128xf32, #tpu.memory_space<vmem>>, vector<16x128xf32>,
    } else {
    }
    return
  }
  func.func @transform_0(%arg0: i32, %arg1: i32) -> (i32, i32) {
    %c0_i32 = arith.constant 0 : i32
    %c0_i32_0 = arith.constant 0 : i32
    return %arg0, %c0_i32 : i32, i32
  }
  func.func @transform_1(%arg0: i32, %arg1: i32) -> (i32, i32) {
    %c0_i32 = arith.constant 0 : i32
    %c0_i32_0 = arith.constant 0 : i32
    return %c0_i32, %arg1 : i32, i32
  }
  func.func @transform_2(%arg0: i32, %arg1: i32) -> (i32, i32) {
    %c0_i32 = arith.constant 0 : i32
    %c0_i32_0 = arith.constant 0 : i32
    return %arg1, %c0_i32 : i32, i32
  }
  func.func @transform_3(%arg0: i32, %arg1: i32) -> (i32, i32) {
    %c0_i32 = arith.constant 0 : i32
    %c0_i32_0 = arith.constant 0 : i32
    return %arg0, %c0_i32 : i32, i32
  }
}

</mosaic_0001>

<llo_original>
// kernel: gated_ffn_fused.1
$region0: #{gated_ffn_fused.1}
  #allocation0 [shape = 'u32[]', space=smem, size = 0x4, offset = 0x4, fixed_abs, tag = 'smem constant byte address 0x4 - core index']
  #allocation1 [shape = 'u32[144,128]{1,0:T(1,128)}', space=vmem, size = 0x12000, scoped, tag = 'internal scratch']
  #allocation2 [shape = 'f32[16,128]{1,0:T(8,128)}', space=vmem, size = 0x2000, scoped, tag = 'scratch operand']
  %s0 = inlined_call_operand.vmem [shape: bf16[16,128], index: 0, kind: input, shape index: {}]
  %s1 = inlined_call_operand.hbm [shape: bf16[128,512], index: 1, kind: input, shape index: {}]
  %s2 = inlined_call_operand.hbm [shape: bf16[256,128], index: 2, kind: input, shape index: {}]
  %s3 = inlined_call_operand.vmem [shape: f32[16,128], index: 3, kind: output, shape index: {}]
  %s4 = sld [smem:[#allocation0]]
  $region38: #{gated_ffn_fused.1} parent=0
    _
  %s6 = ssub.s32 1, %s4
  %s7 = scalar_select 0, %s6, %s4
  $region1: #{gated_ffn_fused.1} parent=0
    #allocation3 [shape = 'u8[131072]{0}', space=vmem, size = 0x20000, scoped, tag = 'input window, operand 1, single buffered']
    #allocation4 [shape = 's32[1]{0}', space=sflag, size = 0x4, scoped, tag = 'scoped memory for gated_ffn_fused.1']
    #allocation5 [shape = 'u8[65536]{0}', space=vmem, size = 0x10000, scoped, tag = 'input window, operand 2, single buffered']
    #allocation6 [shape = 's32[1]{0}', space=sflag, size = 0x4, scoped, tag = 'scoped memory for gated_ffn_fused.1']
    %8 = vsyncpa [#allocation4], 0
    %9 = vsyncpa [#allocation6], 0
    // Predicated region
    $region2: #{gated_ffn_fused.1} parent=1 // pred_check
      _
    $region3: #{gated_ffn_fused.1} parent=1 // pred_check_branch
      %11 = sbr.rel (0) target = $region5
    $region4: #{gated_ffn_fused.1} parent=1 // pred_region
      _
    $region5: #{gated_ffn_fused.1} parent=1 // pred_fallthru
      _
    // Predicated region
    $region6: #{gated_ffn_fused.1} parent=1 // pred_check
      _
    $region7: #{gated_ffn_fused.1} parent=1 // pred_check_branch
      %13 = sbr.rel (0) target = $region9
    $region8: #{gated_ffn_fused.1} parent=1 // pred_region
      %s15 = ssub.s32 4096, 4096
      %16 = vsyncadd [#allocation4], %s15
      %s17 = sshll.u32 [#allocation3], 4
      %s18 = int_to_ptr.vmem [resolvable:$true] %s17
      %23 = dma.hbm_to_vmem [thread:$0]  %s1, 4096, %s18, [#allocation4], 256, 256, 16
    $region9: #{gated_ffn_fused.1} parent=1 // pred_fallthru
      _
    // Predicated region
    $region10: #{gated_ffn_fused.1} parent=1 // pred_check
      _
    $region11: #{gated_ffn_fused.1} parent=1 // pred_check_branch
      %25 = sbr.rel (0) target = $region13
    $region12: #{gated_ffn_fused.1} parent=1 // pred_region
      %s27 = ssub.s32 2048, 2048
      %28 = vsyncadd [#allocation6], %s27
      %s29 = sshll.u32 [#allocation5], 4
      %s30 = int_to_ptr.vmem [resolvable:$true] %s29
      %35 = dma.hbm_to_vmem [thread:$0]  %s2, 2048, %s30, [#allocation6], 64, 64, 4
    $region13: #{gated_ffn_fused.1} parent=1 // pred_fallthru
      _
    // Predicated region
    $region14: #{gated_ffn_fused.1} parent=1 // pred_check
      _
    $region15: #{gated_ffn_fused.1} parent=1 // pred_check_branch
      %37 = sbr.rel (0) target = $region17
    $region16: #{gated_ffn_fused.1} parent=1 // pred_region
      %38 = dma.done [#allocation4], 4096
    $region17: #{gated_ffn_fused.1} parent=1 // pred_fallthru
      _
    // Predicated region
    $region18: #{gated_ffn_fused.1} parent=1 // pred_check
      _
    $region19: #{gated_ffn_fused.1} parent=1 // pred_check_branch
      %40 = sbr.rel (0) target = $region21
    $region20: #{gated_ffn_fused.1} parent=1 // pred_region
      %41 = dma.done [#allocation6], 2048
    $region21: #{gated_ffn_fused.1} parent=1 // pred_fallthru
      _
    %p43 = scmp.eq.s32.totalorder 0, 0
    // Predicated region
    $region22: #{gated_ffn_fused.1} parent=1 // pred_check
      %p44 = pneg %p43
    $region23: #{gated_ffn_fused.1} parent=1 // pred_check_branch
      %46 = sbr.rel (%p44) target = $region25
    $region24: #{gated_ffn_fused.1} parent=1 // pred_region
      %47 = vst [vmem:[#allocation2] sm:$0xff] 0.0
      %48 = vst [vmem:[#allocation2 + $0x8] sm:$0xff] 0.0
    $region25: #{gated_ffn_fused.1} parent=1 // pred_fallthru
      _
    %v49 = vld [vmem:[%s0] sm:$0xf]
    %v50 = vld [vmem:[%s0 + $0x4] sm:$0xf]
    %v51 = vld [vmem:[#allocation3] sm:$0xff]
    %v52 = vld [vmem:[#allocation3 + $0x8] sm:$0xff]
    %v53 = vld [vmem:[#allocation3 + $0x10] sm:$0xff]
    %v54 = vld [vmem:[#allocation3 + $0x18] sm:$0xff]
    %v55 = vld [vmem:[#allocation3 + $0x20] sm:$0xff]
    %v56 = vld [vmem:[#allocation3 + $0x28] sm:$0xff]
    %v57 = vld [vmem:[#allocation3 + $0x30] sm:$0xff]
    %v58 = vld [vmem:[#allocation3 + $0x38] sm:$0xff]
    %v59 = vld [vmem:[#allocation3 + $0x40] sm:$0xff]
    %v60 = vld [vmem:[#allocation3 + $0x48] sm:$0xff]
    %v61 = vld [vmem:[#allocation3 + $0x50] sm:$0xff]
    %v62 = vld [vmem:[#allocation3 + $0x58] sm:$0xff]
    %v63 = vld [vmem:[#allocation3 + $0x60] sm:$0xff]
    %v64 = vld [vmem:[#allocation3 + $0x68] sm:$0xff]
    %v65 = vld [vmem:[#allocation3 + $0x70] sm:$0xff]
    %v66 = vld [vmem:[#allocation3 + $0x78] sm:$0xff]
    %v67 = vld [vmem:[#allocation3 + $0x80] sm:$0xff]
    %v68 = vld [vmem:[#allocation3 + $0x88] sm:$0xff]
    %v69 = vld [vmem:[#allocation3 + $0x90] sm:$0xff]
    %v70 = vld [vmem:[#allocation3 + $0x98] sm:$0xff]
    %v71 = vld [vmem:[#allocation3 + $0xa0] sm:$0xff]
    %v72 = vld [vmem:[#allocation3 + $0xa8] sm:$0xff]
    %v73 = vld [vmem:[#allocation3 + $0xb0] sm:$0xff]
    %v74 = vld [vmem:[#allocation3 + $0xb8] sm:$0xff]
    %v75 = vld [vmem:[#allocation3 + $0xc0] sm:$0xff]
    %v76 = vld [vmem:[#allocation3 + $0xc8] sm:$0xff]
    %v77 = vld [vmem:[#allocation3 + $0xd0] sm:$0xff]
    %v78 = vld [vmem:[#allocation3 + $0xd8] sm:$0xff]
    %v79 = vld [vmem:[#allocation3 + $0xe0] sm:$0xff]
    %v80 = vld [vmem:[#allocation3 + $0xe8] sm:$0xff]
    %v81 = vld [vmem:[#allocation3 + $0xf0] sm:$0xff]
    %v82 = vld [vmem:[#allocation3 + $0xf8] sm:$0xff]
    %v85 = vunpack.c.l.b16 %v49
    %v86 = vunpack.c.l.b16 %v50
    %v87 = vpack.c.b16 %v86, %v85
    %v121 = vunpack.c.l.b16 %v51
    %v122 = vunpack.c.h.b16 %v51
    %v123 = vunpack.c.l.b16 %v52
    %v124 = vunpack.c.h.b16 %v52
    %v125 = vunpack.c.l.b16 %v53
    %v126 = vunpack.c.h.b16 %v53
    %v127 = vunpack.c.l.b16 %v54
    %v128 = vunpack.c.h.b16 %v54
    %v129 = vunpack.c.l.b16 %v55
    %v130 = vunpack.c.h.b16 %v55
    %v131 = vunpack.c.l.b16 %v56
    %v132 = vunpack.c.h.b16 %v56
    %v133 = vunpack.c.l.b16 %v57
    %v134 = vunpack.c.h.b16 %v57
    %v135 = vunpack.c.l.b16 %v58
    %v136 = vunpack.c.h.b16 %v58
    %v137 = vunpack.c.l.b16 %v59
    %v138 = vunpack.c.h.b16 %v59
    %v139 = vunpack.c.l.b16 %v60
    %v140 = vunpack.c.h.b16 %v60
    %v141 = vunpack.c.l.b16 %v61
    %v142 = vunpack.c.h.b16 %v61
    %v143 = vunpack.c.l.b16 %v62
    %v144 = vunpack.c.h.b16 %v62
    %v145 = vunpack.c.l.b16 %v63
    %v146 = vunpack.c.h.b16 %v63
    %v147 = vunpack.c.l.b16 %v64
    %v148 = vunpack.c.h.b16 %v64
    %v149 = vunpack.c.l.b16 %v65
    %v150 = vunpack.c.h.b16 %v65
    %v151 = vunpack.c.l.b16 %v66
    %v152 = vunpack.c.h.b16 %v66
    %v153 = vunpack.c.l.b16 %v67
    %v154 = vunpack.c.h.b16 %v67
    %v155 = vunpack.c.l.b16 %v68
    %v156 = vunpack.c.h.b16 %v68
    %v157 = vunpack.c.l.b16 %v69
    %v158 = vunpack.c.h.b16 %v69
    %v159 = vunpack.c.l.b16 %v70
    %v160 = vunpack.c.h.b16 %v70
    %v161 = vunpack.c.l.b16 %v71
    %v162 = vunpack.c.h.b16 %v71
    %v163 = vunpack.c.l.b16 %v72
    %v164 = vunpack.c.h.b16 %v72
    %v165 = vunpack.c.l.b16 %v73
    %v166 = vunpack.c.h.b16 %v73
    %v167 = vunpack.c.l.b16 %v74
    %v168 = vunpack.c.h.b16 %v74
    %v169 = vunpack.c.l.b16 %v75
    %v170 = vunpack.c.h.b16 %v75
    %v171 = vunpack.c.l.b16 %v76
    %v172 = vunpack.c.h.b16 %v76
    %v173 = vunpack.c.l.b16 %v77
    %v174 = vunpack.c.h.b16 %v77
    %v175 = vunpack.c.l.b16 %v78
    %v176 = vunpack.c.h.b16 %v78
    %v177 = vunpack.c.l.b16 %v79
    %v178 = vunpack.c.h.b16 %v79
    %v179 = vunpack.c.l.b16 %v80
    %v180 = vunpack.c.h.b16 %v80
    %v181 = vunpack.c.l.b16 %v81
    %v182 = vunpack.c.h.b16 %v81
    %v183 = vunpack.c.l.b16 %v82
    %v184 = vunpack.c.h.b16 %v82
    %v185 = vpack.c.b16 %v125, %v121
    %v186 = vpack.c.b16 %v126, %v122
    %v187 = vpack.c.b16 %v127, %v123
    %v188 = vpack.c.b16 %v128, %v124
    %v189 = vpack.c.b16 %v133, %v129
    %v190 = vpack.c.b16 %v134, %v130
    %v191 = vpack.c.b16 %v135, %v131
    %v192 = vpack.c.b16 %v136, %v132
    %v193 = vpack.c.b16 %v141, %v137
    %v194 = vpack.c.b16 %v142, %v138
    %v195 = vpack.c.b16 %v143, %v139
    %v196 = vpack.c.b16 %v144, %v140
    %v197 = vpack.c.b16 %v149, %v145
    %v198 = vpack.c.b16 %v150, %v146
    %v199 = vpack.c.b16 %v151, %v147
    %v200 = vpack.c.b16 %v152, %v148
    %v201 = vpack.c.b16 %v157, %v153
    %v202 = vpack.c.b16 %v158, %v154
    %v203 = vpack.c.b16 %v159, %v155
    %v204 = vpack.c.b16 %v160, %v156
    %v205 = vpack.c.b16 %v165, %v161
    %v206 = vpack.c.b16 %v166, %v162
    %v207 = vpack.c.b16 %v167, %v163
    %v208 = vpack.c.b16 %v168, %v164
    %v209 = vpack.c.b16 %v173, %v169
    %v210 = vpack.c.b16 %v174, %v170
    %v211 = vpack.c.b16 %v175, %v171
    %v212 = vpack.c.b16 %v176, %v172
    %v213 = vpack.c.b16 %v181, %v177
    %v214 = vpack.c.b16 %v182, %v178
    %v215 = vpack.c.b16 %v183, %v179
    %v216 = vpack.c.b16 %v184, %v180
    %249 = vmatprep.subr.bf16.mxu0 %v214
    %250 = vmatpush1.bf16.msra.mxu0 %v213
    %251 = vmatprep.subr.bf16.mxu0 %v210
    %252 = vmatpush1.bf16.msra.mxu0 %v209
    %253 = vmatprep.subr.bf16.mxu0 %v206
    %254 = vmatpush1.bf16.msra.mxu0 %v205
    %255 = vmatprep.subr.bf16.mxu0 %v202
    %256 = vmatpush1.bf16.msra.mxu0 %v201
    %257 = vmatprep.subr.bf16.mxu0 %v198
    %258 = vmatpush1.bf16.msra.mxu0 %v197
    %259 = vmatprep.subr.bf16.mxu0 %v194
    %260 = vmatpush1.bf16.msra.mxu0 %v193
    %261 = vmatprep.subr.bf16.mxu0 %v190
    %262 = vmatpush1.bf16.msra.mxu0 %v189
    %263 = vmatprep.subr.bf16.mxu0 %v186
    %264 = vmatpush1.bf16.msra.mxu0 %v185
    %265 = vmatprep.subr.bf16.mxu0 0
    %266 = vmatpush2.bf16.msra.mxu0 0
    %267 = vmatprep.subr.bf16.mxu0 0
    %268 = vmatpush2.bf16.msra.mxu0 0
    %269 = vmatprep.subr.bf16.mxu0 0
    %270 = vmatpush2.bf16.msra.mxu0 0
    %271 = vmatprep.subr.bf16.mxu0 0
    %272 = vmatpush2.bf16.msra.mxu0 0
    %273 = vmatprep.subr.bf16.mxu0 0
    %274 = vmatpush2.bf16.msra.mxu0 0
    %275 = vmatprep.subr.bf16.mxu0 0
    %276 = vmatpush2.bf16.msra.mxu0 0
    %277 = vmatprep.subr.bf16.mxu0 0
    %278 = vmatpush2.bf16.msra.mxu0 0
    %279 = vmatprep.subr.bf16.mxu0 0
    %280 = vmatpush2.bf16.msra.mxu0 0
    %281 = vmatprep.mubr.bf16.mxu0 0
    %282 = vmatmul.mubr.bf16.gmra.mxu0 %v87
    %v283 = vpop.f32.mrf.mxu0
    %v284 = vadd.f32 0.0, %v283
    %v285 = vpop.f32.mrf.mxu0
    %v286 = vadd.f32 0.0, %v285
    %v287 = vpop.f32.mrf.mxu0
    %v288 = vadd.f32 0.0, %v287
    %v289 = vpop.f32.mrf.mxu0
    %v290 = vadd.f32 0.0, %v289
    %291 = vdwg.mxu0
    %292 = vmatprep.subr.bf16.mxu0 %v216
    %293 = vmatpush1.bf16.msra.mxu0 %v215
    %294 = vmatprep.subr.bf16.mxu0 %v212
    %295 = vmatpush1.bf16.msra.mxu0 %v211
    %296 = vmatprep.subr.bf16.mxu0 %v208
    %297 = vmatpush1.bf16.msra.mxu0 %v207
    %298 = vmatprep.subr.bf16.mxu0 %v204
    %299 = vmatpush1.bf16.msra.mxu0 %v203
    %300 = vmatprep.subr.bf16.mxu0 %v200
    %301 = vmatpush1.bf16.msra.mxu0 %v199
    %302 = vmatprep.subr.bf16.mxu0 %v196
    %303 = vmatpush1.bf16.msra.mxu0 %v195
    %304 = vmatprep.subr.bf16.mxu0 %v192
    %305 = vmatpush1.bf16.msra.mxu0 %v191
    %306 = vmatprep.subr.bf16.mxu0 %v188
    %307 = vmatpush1.bf16.msra.mxu0 %v187
    %308 = vmatprep.subr.bf16.mxu0 0
    %309 = vmatpush2.bf16.msra.mxu0 0
    %310 = vmatprep.subr.bf16.mxu0 0
    %311 = vmatpush2.bf16.msra.mxu0 0
    %312 = vmatprep.subr.bf16.mxu0 0
    %313 = vmatpush2.bf16.msra.mxu0 0
    %314 = vmatprep.subr.bf16.mxu0 0
    %315 = vmatpush2.bf16.msra.mxu0 0
    %316 = vmatprep.subr.bf16.mxu0 0
    %317 = vmatpush2.bf16.msra.mxu0 0
    %318 = vmatprep.subr.bf16.mxu0 0
    %319 = vmatpush2.bf16.msra.mxu0 0
    %320 = vmatprep.subr.bf16.mxu0 0
    %321 = vmatpush2.bf16.msra.mxu0 0
    %322 = vmatprep.subr.bf16.mxu0 0
    %323 = vmatpush2.bf16.msra.mxu0 0
    %324 = vmatprep.mubr.bf16.mxu0 0
    %325 = vmatmul.mubr.bf16.gmra.mxu0 %v87
    %v326 = vpop.f32.mrf.mxu0
    %v327 = vadd.f32 0.0, %v326
    %v328 = vpop.f32.mrf.mxu0
    %v329 = vadd.f32 0.0, %v328
    %v330 = vpop.f32.mrf.mxu0
    %v331 = vadd.f32 0.0, %v330
    %v332 = vpop.f32.mrf.mxu0
    %v333 = vadd.f32 0.0, %v332
    %334 = vdwg.mxu0
    %v335 = vxor.u32 %v327, 2147483648
    %v336 = vxor.u32 %v329, 2147483648
    %v337 = vxor.u32 %v331, 2147483648
    %v338 = vxor.u32 %v333, 2147483648
    %v339 = vmul.f32 %v335, 1.442695
    %v340 = vpow.pop %v339
    %v341 = vmul.f32 %v336, 1.442695
    %v342 = vpow.pop %v341
    %v343 = vmul.f32 %v337, 1.442695
    %v344 = vpow.pop %v343
    %v345 = vmul.f32 %v338, 1.442695
    %v346 = vpow.pop %v345
    %v347 = vadd.f32 %v340, 1.0
    %v348 = vadd.f32 %v342, 1.0
    %v349 = vadd.f32 %v344, 1.0
    %v350 = vadd.f32 %v346, 1.0
    %v351 = vrcp.pop %v347
    %v352 = vmul.f32 1.0, %v351
    %v353 = vrcp.pop %v348
    %v354 = vmul.f32 1.0, %v353
    %v355 = vrcp.pop %v349
    %v356 = vmul.f32 1.0, %v355
    %v357 = vrcp.pop %v350
    %v358 = vmul.f32 1.0, %v357
    %v359 = vmul.f32 %v327, %v352
    %v360 = vmul.f32 %v329, %v354
    %v361 = vmul.f32 %v331, %v356
    %v362 = vmul.f32 %v333, %v358
    %v363 = vmul.f32 %v284, %v359
    %v364 = vmul.f32 %v286, %v360
    %v365 = vmul.f32 %v288, %v361
    %v366 = vmul.f32 %v290, %v362
    %v367 = vld [vmem:[#allocation2] sm:$0xff]
    %v368 = vld [vmem:[#allocation2 + $0x8] sm:$0xff]
    %v369 = vpack.c.bf16 %v365, %v363
    %v370 = vpack.c.bf16 %v366, %v364
    %v371 = vld [vmem:[#allocation5] sm:$0xf]
    %v372 = vld [vmem:[#allocation5 + $0x4] sm:$0xf]
    %v373 = vld [vmem:[#allocation5 + $0x8] sm:$0xf]
    %v374 = vld [vmem:[#allocation5 + $0xc] sm:$0xf]
    %v375 = vld [vmem:[#allocation5 + $0x10] sm:$0xf]
    %v376 = vld [vmem:[#allocation5 + $0x14] sm:$0xf]
    %v377 = vld [vmem:[#allocation5 + $0x18] sm:$0xf]
    %v378 = vld [vmem:[#allocation5 + $0x1c] sm:$0xf]
    %v379 = vld [vmem:[#allocation5 + $0x20] sm:$0xf]
    %v380 = vld [vmem:[#allocation5 + $0x24] sm:$0xf]
    %v381 = vld [vmem:[#allocation5 + $0x28] sm:$0xf]
    %v382 = vld [vmem:[#allocation5 + $0x2c] sm:$0xf]
    %v383 = vld [vmem:[#allocation5 + $0x30] sm:$0xf]
    %v384 = vld [vmem:[#allocation5 + $0x34] sm:$0xf]
    %v385 = vld [vmem:[#allocation5 + $0x38] sm:$0xf]
    %v386 = vld [vmem:[#allocation5 + $0x3c] sm:$0xf]
    %v387 = vld [vmem:[#allocation5 + $0x40] sm:$0xf]
    %v388 = vld [vmem:[#allocation5 + $0x44] sm:$0xf]
    %v389 = vld [vmem:[#allocation5 + $0x48] sm:$0xf]
    %v390 = vld [vmem:[#allocation5 + $0x4c] sm:$0xf]
    %v391 = vld [vmem:[#allocation5 + $0x50] sm:$0xf]
    %v392 = vld [vmem:[#allocation5 + $0x54] sm:$0xf]
    %v393 = vld [vmem:[#allocation5 + $0x58] sm:$0xf]
    %v394 = vld [vmem:[#allocation5 + $0x5c] sm:$0xf]
    %v395 = vld [vmem:[#allocation5 + $0x60] sm:$0xf]
    %v396 = vld [vmem:[#allocation5 + $0x64] sm:$0xf]
    %v397 = vld [vmem:[#allocation5 + $0x68] sm:$0xf]
    %v398 = vld [vmem:[#allocation5 + $0x6c] sm:$0xf]
    %v399 = vld [vmem:[#allocation5 + $0x70] sm:$0xf]
    %v400 = vld [vmem:[#allocation5 + $0x74] sm:$0xf]
    %v401 = vld [vmem:[#allocation5 + $0x78] sm:$0xf]
    %v402 = vld [vmem:[#allocation5 + $0x7c] sm:$0xf]
    %v435 = vunpack.c.l.b16 %v371
    %v436 = vunpack.c.l.b16 %v372
    %v437 = vunpack.c.l.b16 %v373
    %v438 = vunpack.c.l.b16 %v374
    %v439 = vunpack.c.l.b16 %v375
    %v440 = vunpack.c.l.b16 %v376
    %v441 = vunpack.c.l.b16 %v377
    %v442 = vunpack.c.l.b16 %v378
    %v443 = vunpack.c.l.b16 %v379
    %v444 = vunpack.c.l.b16 %v380
    %v445 = vunpack.c.l.b16 %v381
    %v446 = vunpack.c.l.b16 %v382
    %v447 = vunpack.c.l.b16 %v383
    %v448 = vunpack.c.l.b16 %v384
    %v449 = vunpack.c.l.b16 %v385
    %v450 = vunpack.c.l.b16 %v386
    %v451 = vunpack.c.l.b16 %v387
    %v452 = vunpack.c.l.b16 %v388
    %v453 = vunpack.c.l.b16 %v389
    %v454 = vunpack.c.l.b16 %v390
    %v455 = vunpack.c.l.b16 %v391
    %v456 = vunpack.c.l.b16 %v392
    %v457 = vunpack.c.l.b16 %v393
    %v458 = vunpack.c.l.b16 %v394
    %v459 = vunpack.c.l.b16 %v395
    %v460 = vunpack.c.l.b16 %v396
    %v461 = vunpack.c.l.b16 %v397
    %v462 = vunpack.c.l.b16 %v398
    %v463 = vunpack.c.l.b16 %v399
    %v464 = vunpack.c.l.b16 %v400
    %v465 = vunpack.c.l.b16 %v401
    %v466 = vunpack.c.l.b16 %v402
    %v467 = vpack.c.b16 %v436, %v435
    %v468 = vpack.c.b16 %v438, %v437
    %v469 = vpack.c.b16 %v440, %v439
    %v470 = vpack.c.b16 %v442, %v441
    %v471 = vpack.c.b16 %v444, %v443
    %v472 = vpack.c.b16 %v446, %v445
    %v473 = vpack.c.b16 %v448, %v447
    %v474 = vpack.c.b16 %v450, %v449
    %v475 = vpack.c.b16 %v452, %v451
    %v476 = vpack.c.b16 %v454, %v453
    %v477 = vpack.c.b16 %v456, %v455
    %v478 = vpack.c.b16 %v458, %v457
    %v479 = vpack.c.b16 %v460, %v459
    %v480 = vpack.c.b16 %v462, %v461
    %v481 = vpack.c.b16 %v464, %v463
    %v482 = vpack.c.b16 %v466, %v465
    %499 = vmatprep.subr.bf16.mxu0 0
    %500 = vmatpush1.bf16.msra.mxu0 %v474
    %501 = vmatprep.subr.bf16.mxu0 0
    %502 = vmatpush1.bf16.msra.mxu0 %v473
    %503 = vmatprep.subr.bf16.mxu0 0
    %504 = vmatpush1.bf16.msra.mxu0 %v472
    %505 = vmatprep.subr.bf16.mxu0 0
    %506 = vmatpush1.bf16.msra.mxu0 %v471
    %507 = vmatprep.subr.bf16.mxu0 0
    %508 = vmatpush1.bf16.msra.mxu0 %v470
    %509 = vmatprep.subr.bf16.mxu0 0
    %510 = vmatpush1.bf16.msra.mxu0 %v469
    %511 = vmatprep.subr.bf16.mxu0 0
    %512 = vmatpush1.bf16.msra.mxu0 %v468
    %513 = vmatprep.subr.bf16.mxu0 0
    %514 = vmatpush1.bf16.msra.mxu0 %v467
    %515 = vmatprep.subr.bf16.mxu0 0
    %516 = vmatpush2.bf16.msra.mxu0 %v482
    %517 = vmatprep.subr.bf16.mxu0 0
    %518 = vmatpush2.bf16.msra.mxu0 %v481
    %519 = vmatprep.subr.bf16.mxu0 0
    %520 = vmatpush2.bf16.msra.mxu0 %v480
    %521 = vmatprep.subr.bf16.mxu0 0
    %522 = vmatpush2.bf16.msra.mxu0 %v479
    %523 = vmatprep.subr.bf16.mxu0 0
    %524 = vmatpush2.bf16.msra.mxu0 %v478
    %525 = vmatprep.subr.bf16.mxu0 0
    %526 = vmatpush2.bf16.msra.mxu0 %v477
    %527 = vmatprep.subr.bf16.mxu0 0
    %528 = vmatpush2.bf16.msra.mxu0 %v476
    %529 = vmatprep.subr.bf16.mxu0 0
    %530 = vmatpush2.bf16.msra.mxu0 %v475
    %531 = vmatprep.mubr.bf16.mxu0 %v370
    %532 = vmatmul.mubr.bf16.gmra.mxu0 %v369
    %v533 = vpop.f32.mrf.mxu0
    %v534 = vadd.f32 0.0, %v533
    %v535 = vpop.f32.mrf.mxu0
    %v536 = vpop.f32.mrf.mxu0
    %v537 = vadd.f32 0.0, %v536
    %v538 = vpop.f32.mrf.mxu0
    %539 = vdwg.mxu0
    %v540 = vadd.f32 %v367, %v534
    %v541 = vadd.f32 %v368, %v537
    %542 = vst [vmem:[#allocation2] sm:$0xff] %v540
    %543 = vst [vmem:[#allocation2 + $0x8] sm:$0xff] %v541
    // Predicated region
    $region26: #{gated_ffn_fused.1} parent=1 // pred_check
      %p544 = pneg %p43
    $region27: #{gated_ffn_fused.1} parent=1 // pred_check_branch
      %546 = sbr.rel (%p544) target = $region29
    $region28: #{gated_ffn_fused.1} parent=1 // pred_region
      %v547 = vld [vmem:[#allocation2] sm:$0xff]
      %v548 = vld [vmem:[#allocation2 + $0x8] sm:$0xff]
      %549 = vst [vmem:[%s3] sm:$0xff] %v547
      %550 = vst [vmem:[%s3 + $0x8] sm:$0xff] %v548
    $region29: #{gated_ffn_fused.1} parent=1 // pred_fallthru
      _
    // Predicated region
    $region30: #{gated_ffn_fused.1} parent=1 // pred_check
      _
    $region31: #{gated_ffn_fused.1} parent=1 // pred_check_branch
      %552 = sbr.rel (0) target = $region33
    $region32: #{gated_ffn_fused.1} parent=1 // pred_region
      _
    $region33: #{gated_ffn_fused.1} parent=1 // pred_fallthru
      _
    // Predicated region
    $region34: #{gated_ffn_fused.1} parent=1 // pred_check
      _
    $region35: #{gated_ffn_fused.1} parent=1 // pred_check_branch
      %554 = sbr.rel (0) target = $region37
    $region36: #{gated_ffn_fused.1} parent=1 // pred_region
      _
    $region37: #{gated_ffn_fused.1} parent=1 // pred_fallthru
      _
    %555 = vsyncpa [#allocation4], 1
    %556 = vsyncpa [#allocation6], 1

</llo_original>
